<compile_context>
chip_gen: v6e
topology: v6e:2x2x1
jax: 0.10.0
libtpu: 0.0.40
codegen_flags: <defaults>
</compile_context>

<pallas_src>
import jax
import jax.numpy as jnp
from jax import lax
from jax.experimental import pallas as pl
from jax.experimental.pallas import tpu as pltpu


NEG_INF = -1e30


def cq_attention_kernel(c_ref, q_ref, bias_ref, w_ref, o_ref):
    """One (batch, Lc-tile) step.

    c_ref:    (TM, D)       context rows for this tile (input dtype)
    q_ref:    (Lq_pad, D)   full question, already in matmul dtype (bf16/f32)
    bias_ref: (1, Lq_pad)   additive mask bias (0 for valid, -1e30 for masked/pad)
    w_ref:    (2, D)        trilinear weight rows [w_q, w_cq]  (w_c term cancels)
    o_ref:    (TM, 2*D)     output tile: concat([A, C*A], axis=-1)
    """
    c = c_ref[...].astype(jnp.float32)            # (TM, D)
    q = q_ref[...]                                # (Lq_pad, D), matmul dtype
    bias = bias_ref[...]                          # (1, Lq_pad) f32
    w = w_ref[...].astype(jnp.float32)            # (2, D)
    w_q = w[0:1, :]                               # (1, D)
    w_cq = w[1:2, :]                              # (1, D)

    # S[i,j] = sum_d (c[i,d]*w_cq[d] + w_q[d]) * q[j,d]   (+ c.w_c dropped)
    lhs = (c * w_cq + w_q).astype(q.dtype)        # (TM, D)

    # NT matmul contracting D of both operands -> (TM, Lq_pad), f32 accumulate.
    s = lax.dot_general(lhs, q, (((1,), (1,)), ((), ())),
                        preferred_element_type=jnp.float32)
    s = s + bias                                  # single fused masking pass

    # Softmax over Lq with deferred normalization (flash-attention style).
    m = jnp.max(s, axis=-1, keepdims=True)        # (TM, 1)
    p = jnp.exp(s - m)                            # (TM, Lq_pad), unnormalized
    denom = jnp.sum(p, axis=-1, keepdims=True)    # (TM, 1)
    inv = pl.reciprocal(denom, approx=True)       # (TM, 1), EUP

    a = jnp.dot(p.astype(q.dtype), q,
                preferred_element_type=jnp.float32)   # (TM, D)
    a = a * inv                                       # normalize after the matmul

    d = c_ref.shape[-1]
    if d % 128 == 0:
        # Two lane-aligned stores; avoids the concat's pre-store relayout.
        o_ref[:, :d] = a.astype(o_ref.dtype)
        o_ref[:, d:] = (c * a).astype(o_ref.dtype)
    else:
        # D=64 etc.: concat yields a single lane-dense slab.
        o_ref[...] = jnp.concatenate([a, c * a], axis=-1).astype(o_ref.dtype)


def _round_up(x, m):
    return ((x + m - 1) // m) * m


def _choose_tile_m(lc, batch, cap):
    """Pick a 128-aligned Lc row tile minimizing padded rows; keep >=2 grid steps."""
    cap = max(128, (cap // 128) * 128)
    target = _round_up(lc, 128)
    if target <= cap:
        tile = target
        # With a tiny batch, split Lc so both v7x TensorCores get work.
        if batch < 2 and tile > 128:
            tile = _round_up(-(-lc // 2), 128)
        return tile
    # lc > cap: choose the multiple of 128 <= cap that minimizes row padding.
    best_tile, best_pad = cap, _round_up(lc, cap) - lc
    t = cap - 128
    while t >= 128:
        pad = _round_up(lc, t) - lc
        if pad < best_pad:
            best_tile, best_pad = t, pad
        t -= 128
    return best_tile


def cq_attention_forward(C, Q, cmask, qmask, w, *,
                         tile_m_cap=512, matmul_dtype=jnp.bfloat16):
    """CQAttention forward (inference).

    C: (B, Lc, D), Q: (B, Lq, D), cmask: (B, Lc), qmask: (B, Lq), w: (3*D,)
    Returns (B, Lc, 2*D).

    matmul_dtype: dtype fed to the MXU (f32 accumulation). bf16 is the default
    (native MXU dtype on v5e/v6e/v7x); pass None for the exact input-dtype path.
    tile_m_cap: sweep up to 1024-2048 on v5e/v6e; 512 is a safe v7x default.
    """
    B, Lc, D = C.shape
    Lq = Q.shape[1]
    del cmask  # computed but never used by the reference module's math
    # TODO(synk): training-mode dropout (p=0.1) is not applied; eval forward only.

    # Weight rows [w_q, w_cq]; the c.w_c term is softmax-invariant and dropped.
    w_qcq = w.reshape(3, D)[1:3]                               # (2, D)

    # Pad Lq to a lane-aligned multiple of 128; padded columns get bias -1e30.
    lq_pad = _round_up(Lq, 128)
    mm_dtype = C.dtype if matmul_dtype is None else matmul_dtype
    Q_in = Q.astype(mm_dtype)
    if lq_pad != Lq:
        Q_in = jnp.pad(Q_in, ((0, 0), (0, lq_pad - Lq), (0, 0)))
    bias = qmask.astype(jnp.float32) * NEG_INF                 # (B, Lq)
    if lq_pad != Lq:
        bias = jnp.pad(bias, ((0, 0), (0, lq_pad - Lq)), constant_values=NEG_INF)
    bias = bias.reshape(B, 1, lq_pad)

    # 128-aligned row tile over Lc; pad Lc so the grid covers it exactly.
    tile_m = _choose_tile_m(Lc, B, tile_m_cap)
    lc_pad = _round_up(Lc, tile_m)
    C_in = C if lc_pad == Lc else jnp.pad(C, ((0, 0), (0, lc_pad - Lc), (0, 0)))
    grid = (B, lc_pad // tile_m)

    out_itemsize = jnp.dtype(C.dtype).itemsize
    cost = pl.CostEstimate(
        flops=4 * B * lc_pad * lq_pad * D,
        transcendentals=B * lc_pad * lq_pad,
        bytes_accessed=(C_in.size * C_in.dtype.itemsize
                        + Q_in.size * Q_in.dtype.itemsize
                        + bias.size * 4 + w_qcq.size * 4
                        + B * lc_pad * 2 * D * out_itemsize),
    )

    out = pl.pallas_call(
        cq_attention_kernel,
        out_shape=jax.ShapeDtypeStruct((B, lc_pad, 2 * D), C.dtype),
        grid_spec=pltpu.PrefetchScalarGridSpec(
            num_scalar_prefetch=0,
            grid=grid,
            in_specs=[
                pl.BlockSpec((None, tile_m, D), lambda b, i: (b, i, 0)),   # C
                pl.BlockSpec((None, lq_pad, D), lambda b, i: (b, 0, 0)),   # Q
                pl.BlockSpec((None, 1, lq_pad), lambda b, i: (b, 0, 0)),   # bias
                pl.BlockSpec((2, D), lambda b, i: (0, 0)),                 # w
            ],
            out_specs=pl.BlockSpec((None, tile_m, 2 * D),
                                   lambda b, i: (b, i, 0)),
        ),
        compiler_params=pltpu.CompilerParams(
            dimension_semantics=("parallel", "parallel")),
        cost_estimate=cost,
    )(C_in, Q_in, bias, w_qcq)

    return out[:, :Lc, :]


def cq_attention_reference(C, Q, cmask, qmask, w):
    """Pure-JAX mirror of the PyTorch module (eval mode, dropout = identity)."""
    B, Lc, D = C.shape
    Lq = Q.shape[1]
    del cmask
    qmask_b = qmask[:, None, :]                                   # (B, 1, Lq)
    shape = (B, Lc, Lq, D)
    Ct = jnp.broadcast_to(C[:, :, None, :], shape)
    Qt = jnp.broadcast_to(Q[:, None, :, :], shape)
    CQ = Ct * Qt
    Scat = jnp.concatenate([Ct, Qt, CQ], axis=3)                  # (B,Lc,Lq,3D)
    S = jnp.einsum('bijk,k->bij', Scat, w)
    S1 = jax.nn.softmax(S * (1.0 - qmask_b) + qmask_b * NEG_INF, axis=2)
    A = jnp.einsum('bij,bjd->bid', S1, Q)
    return jnp.concatenate([A, C * A], axis=2)


if __name__ == "__main__":
    key = jax.random.PRNGKey(0)
    k_c, k_q, k_w = jax.random.split(key, 3)

    B, Lc, Lq, D = 2, 100, 40, 64

    C = jax.random.normal(k_c, (B, Lc, D), jnp.float32)
    Q = jax.random.normal(k_q, (B, Lq, D), jnp.float32)

    lim = (1.0 / D) ** 0.5
    w = jax.random.uniform(k_w, (3 * D,), jnp.float32, -lim, lim)

    # masks: 1.0 == padded / masked position (mask_logits convention)
    c_len = jnp.array([Lc, Lc - 17], dtype=jnp.int32)
    q_len = jnp.array([Lq, Lq - 9], dtype=jnp.int32)
    cmask = (jnp.arange(Lc)[None, :] >= c_len[:, None]).astype(jnp.float32)
    qmask = (jnp.arange(Lq)[None, :] >= q_len[:, None]).astype(jnp.float32)

    ref = cq_attention_reference(C, Q, cmask, qmask, w)

    # Default path: bf16 MXU inputs, f32 accumulation.
    out_bf16 = jax.block_until_ready(cq_attention_forward(C, Q, cmask, qmask, w))
    assert out_bf16.shape == (B, Lc, 2 * D)
    assert jnp.allclose(out_bf16, ref, atol=5e-2, rtol=5e-2), \
        float(jnp.max(jnp.abs(out_bf16 - ref)))

    # Exact (input-dtype f32) MXU path for a tight correctness check.
    out_f32 = jax.block_until_ready(
        cq_attention_forward(C, Q, cmask, qmask, w, matmul_dtype=None))
    assert out_f32.shape == (B, Lc, 2 * D)
    assert jnp.allclose(out_f32, ref, atol=5e-3, rtol=5e-3), \
        float(jnp.max(jnp.abs(out_f32 - ref)))

    print("KERNEL_OK")
</pallas_src>

<mosaic_0001>
module attributes {stable_mosaic.version = 11 : i64} {
  func.func @cq_attention_kernel(%arg0: i32, %arg1: i32, %arg2: memref<1x128x64xf32, #tpu.memory_space<vmem>>, %arg3: memref<1x128x64xbf16, #tpu.memory_space<vmem>>, %arg4: memref<1x1x128xf32, #tpu.memory_space<vmem>>, %arg5: memref<2x64xf32, #tpu.memory_space<vmem>>, %arg6: memref<1x128x128xf32, #tpu.memory_space<vmem>>) attributes {dimension_semantics = [#tpu.dimension_semantics<parallel>, #tpu.dimension_semantics<parallel>], iteration_bounds = array<i64: 2, 1>, scalar_prefetch = 0 : i64, scratch_operands = 0 : i64, tpu.core_type = #tpu.core_type<tc>, window_params = [{transform_indices = @transform_0, window_bounds = array<i64: 1, 128, 64>}, {transform_indices = @transform_1, window_bounds = array<i64: 1, 128, 64>}, {transform_indices = @transform_2, window_bounds = array<i64: 1, 1, 128>}, {pipeline_mode = #tpu.pipeline_mode<synchronous>, transform_indices = @transform_3, window_bounds = array<i64: 2, 64>}, {transform_indices = @transform_4, window_bounds = array<i64: 1, 128, 128>}]} {
    %c0 = arith.constant 0 : index
    %c0_0 = arith.constant 0 : index
    %c0_1 = arith.constant 0 : index
    %0 = vector.load %arg2[%c0, %c0_0, %c0_1] : memref<1x128x64xf32, #tpu.memory_space<vmem>>, vector<1x128x64xf32>
    %1 = vector.shape_cast %0 : vector<1x128x64xf32> to vector<128x64xf32>
    %c0_2 = arith.constant 0 : index
    %c0_3 = arith.constant 0 : index
    %c0_4 = arith.constant 0 : index
    %2 = vector.load %arg3[%c0_2, %c0_3, %c0_4] : memref<1x128x64xbf16, #tpu.memory_space<vmem>>, vector<1x128x64xbf16>
    %3 = vector.shape_cast %2 : vector<1x128x64xbf16> to vector<128x64xbf16>
    %c0_5 = arith.constant 0 : index
    %c0_6 = arith.constant 0 : index
    %c0_7 = arith.constant 0 : index
    %4 = vector.load %arg4[%c0_5, %c0_6, %c0_7] : memref<1x1x128xf32, #tpu.memory_space<vmem>>, vector<1x1x128xf32>
    %5 = vector.shape_cast %4 : vector<1x1x128xf32> to vector<1x128xf32>
    %c0_8 = arith.constant 0 : index
    %c0_9 = arith.constant 0 : index
    %6 = vector.load %arg5[%c0_8, %c0_9] : memref<2x64xf32, #tpu.memory_space<vmem>>, vector<2x64xf32>
    %7 = vector.extract_strided_slice %6 {offsets = [0, 0], sizes = [1, 64], strides = [1, 1]} : vector<2x64xf32> to vector<1x64xf32>
    %8 = vector.extract_strided_slice %6 {offsets = [1, 0], sizes = [1, 64], strides = [1, 1]} : vector<2x64xf32> to vector<1x64xf32>
    %9 = vector.broadcast %8 : vector<1x64xf32> to vector<128x64xf32>
    %10 = arith.mulf %1, %9 : vector<128x64xf32>
    %11 = vector.broadcast %7 : vector<1x64xf32> to vector<128x64xf32>
    %12 = arith.addf %10, %11 : vector<128x64xf32>
    %13 = arith.truncf %12 : vector<128x64xf32> to vector<128x64xbf16>
    %cst = arith.constant dense<0.000000e+00> : vector<128x128xf32>
    %14 = tpu.matmul %13, %3, %cst {dimension_numbers = #tpu.dot_dimension_numbers<[1], [1], [0], [0], [0, 0, 1, 0], [], []>} : vector<128x64xbf16>, vector<128x64xbf16>, vector<128x128xf32> -> vector<128x128xf32>
    %15 = vector.broadcast %5 : vector<1x128xf32> to vector<128x128xf32>
    %16 = arith.addf %14, %15 : vector<128x128xf32>
    %cst_10 = arith.constant dense<0xFF800000> : vector<128xf32>
    %17 = vector.multi_reduction <maximumf>, %16, %cst_10 [1] : vector<128x128xf32> to vector<128xf32>
    %18 = vector.shape_cast %17 : vector<128xf32> to vector<128x1xf32>
    %19 = vector.broadcast %18 : vector<128x1xf32> to vector<128x128xf32>
    %20 = arith.subf %16, %19 : vector<128x128xf32>
    %21 = math.exp %20 : vector<128x128xf32>
    %cst_11 = arith.constant dense<0.000000e+00> : vector<128xf32>
    %22 = vector.multi_reduction <add>, %21, %cst_11 [1] : vector<128x128xf32> to vector<128xf32>
    %23 = vector.shape_cast %22 : vector<128xf32> to vector<128x1xf32>
    %24 = tpu.reciprocal %23 {approx = true} : vector<128x1xf32> -> vector<128x1xf32>
    %25 = arith.truncf %21 : vector<128x128xf32> to vector<128x128xbf16>
    %cst_12 = arith.constant dense<0.000000e+00> : vector<128x64xf32>
    %26 = tpu.matmul %25, %3, %cst_12 {dimension_numbers = #tpu.dot_dimension_numbers<[1], [0], [0], [1], [0, 0, 1, 1], [], []>} : vector<128x128xbf16>, vector<128x64xbf16>, vector<128x64xf32> -> vector<128x64xf32>
    %27 = vector.broadcast %24 : vector<128x1xf32> to vector<128x64xf32>
    %28 = arith.mulf %26, %27 : vector<128x64xf32>
    %29 = arith.mulf %1, %28 : vector<128x64xf32>
    %30 = tpu.concatenate %28, %29 in 1 : vector<128x64xf32>, vector<128x64xf32> -> vector<128x128xf32>
    %c0_13 = arith.constant 0 : index
    %c0_14 = arith.constant 0 : index
    %c0_15 = arith.constant 0 : index
    %31 = vector.load %arg6[%c0_13, %c0_14, %c0_15] : memref<1x128x128xf32, #tpu.memory_space<vmem>>, vector<1x128x128xf32>
    %32 = vector.shape_cast %31 : vector<1x128x128xf32> to vector<128x128xf32>
    %33 = vector.shape_cast %30 : vector<128x128xf32> to vector<1x128x128xf32>
    tpu.vector_store %arg6[%c0_13, %c0_14, %c0_15], %33 {strides = array<i32>} : memref<1x128x128xf32, #tpu.memory_space<vmem>>, vector<1x128x128xf32>,
    return
  }
  func.func @transform_0(%arg0: i32, %arg1: i32) -> (i32, i32, i32) {
    %c0_i32 = arith.constant 0 : i32
    %c0_i32_0 = arith.constant 0 : i32
    return %arg0, %arg1, %c0_i32 : i32, i32, i32
  }
  func.func @transform_1(%arg0: i32, %arg1: i32) -> (i32, i32, i32) {
    %c0_i32 = arith.constant 0 : i32
    %c0_i32_0 = arith.constant 0 : i32
    %c0_i32_1 = arith.constant 0 : i32
    return %arg0, %c0_i32, %c0_i32_0 : i32, i32, i32
  }
  func.func @transform_2(%arg0: i32, %arg1: i32) -> (i32, i32, i32) {
    %c0_i32 = arith.constant 0 : i32
    %c0_i32_0 = arith.constant 0 : i32
    %c0_i32_1 = arith.constant 0 : i32
    return %arg0, %c0_i32, %c0_i32_0 : i32, i32, i32
  }
  func.func @transform_3(%arg0: i32, %arg1: i32) -> (i32, i32) {
    %c0_i32 = arith.constant 0 : i32
    %c0_i32_0 = arith.constant 0 : i32
    %c0_i32_1 = arith.constant 0 : i32
    return %c0_i32, %c0_i32_0 : i32, i32
  }
  func.func @transform_4(%arg0: i32, %arg1: i32) -> (i32, i32, i32) {
    %c0_i32 = arith.constant 0 : i32
    %c0_i32_0 = arith.constant 0 : i32
    return %arg0, %arg1, %c0_i32 : i32, i32, i32
  }
}

</mosaic_0001>

<llo_original>
// kernel: tpu_custom_call.1
$region0: #{tpu_custom_call.1}
  #allocation0 [shape = 'u32[]', space=smem, size = 0x4, offset = 0x4, fixed_abs, tag = 'smem constant byte address 0x4 - core index']
  #allocation1 [shape = 'u32[144,128]{1,0:T(1,128)}', space=vmem, size = 0x12000, scoped, tag = 'internal scratch']
  %s0 = inlined_call_operand.vmem [shape: f32[2,128,64], index: 0, kind: input, shape index: {}]
  %s1 = inlined_call_operand.vmem [shape: bf16[2,128,64], index: 1, kind: input, shape index: {}]
  %s2 = inlined_call_operand.vmem [shape: f32[2,1,128], index: 2, kind: input, shape index: {}]
  %s3 = inlined_call_operand.vmem [shape: f32[2,64], index: 3, kind: input, shape index: {}]
  %s4 = inlined_call_operand.hbm [shape: f32[2,128,128], index: 4, kind: output, shape index: {}]
  %s5 = sld [smem:[#allocation0]]
  $region49: #{tpu_custom_call.1} parent=0
    _
  %s7 = ssub.s32 1, %s5
  %s8 = scalar_select 0, %s7, %s5
  $region1: #{tpu_custom_call.1} parent=0
    #allocation2 [shape = 'u8[131072]{0}', space=vmem, size = 0x20000, scoped, tag = 'output window, operand 0']
    #allocation3 [shape = 's32[2]{0}', space=sflag, size = 0x8, scoped, tag = 'scoped memory for tpu_custom_call.1']
    %9 = vsyncpa [#allocation3], 0
    %s10 = scalar_lea.sflag [#allocation3], 1
    %11 = vsyncpa %s10, 0
    loop: start=0, step=1, limit=4
    $region2: #{tpu_custom_call.1} parent=1 // loop_pre_header
      _
    $region3: #{tpu_custom_call.1} parent=1 // loop_header
      %s13 = sphi 0, %s17
      %p14 = scmp.ge.s32.totalorder %s13, 4
      %s20 = sphi 0, %s32
      %s21 = sphi 0, %s28
      %s22 = sphi 0, %s20
      %s23 = sphi 0, %s21
      %s24 = sphi 0, %s22
      %s25 = sphi 0, %s23
      %s37 = sphi 0, %s39
      %s40 = sphi 0, %s37
      %s41 = sphi 0, %s40
      %s57 = sphi 0, %s41
      %s63 = sphi 0, %s65
      %s66 = sphi 0, %s63
      %s67 = sphi 0, %s66
      %s83 = sphi 0, %s67
      %s89 = sphi 0, %s91
      %s92 = sphi 0, %s89
      %s93 = sphi 0, %s92
      %s109 = sphi 0, %s93
      %s113 = sphi 0, %s113
      %s115 = sphi 0, %s113
      %s116 = sphi 0, %s115
      %s130 = sphi 0, %s116
      %s138 = sphi 0, %s140
      %s141 = sphi 0, %s138
      %s142 = sphi 0, %s141
      %s158 = sphi 0, %s142
    $region4: #{tpu_custom_call.1} parent=1 // loop_header_branch
      %16 = sbr.rel (%p14) target = $region8
    $region5: #{tpu_custom_call.1} parent=1 // loop_body
      %s18 = ssub.s32 %s13, 1
      %s19 = ssub.s32 %s13, 2
      %s26 = sadd.s32 1, %s21
      %p27 = scmp.ge.s32.totalorder %s26, 1
      %s28 = scalar_select %p27, 0, %s26
      %s29 = sadd.s32 1, %s20
      %s30 = scalar_select %p27, %s29, %s20
      %p31 = scmp.ge.s32.totalorder %s30, 2
      %s32 = scalar_select %p31, 0, %s30
      %s33 = ssub.s32 %s20, %s32
      %s34 = ssub.s32 %s21, %s28
      %s35 = sor.u32 %s33, %s34
      %p36 = scmp.eq.s32.totalorder %s35, 0
      %s38 = sadd.s32 %s37, 1
      %s39 = scalar_select %p36, %s37, %s38
      %p42 = pneg %p36
      %p43 = scmp.eq.s32.totalorder %s13, 1
      %p44 = por %p42, %p43
      %p45 = scmp.ne.s32.totalorder %s37, %s40
      %p46 = scmp.eq.s32.totalorder %s13, 0
      %p47 = por %p45, %p46
      %p48 = scmp.ne.s32.totalorder %s37, %s40
      %p49 = scmp.eq.s32.totalorder %s18, 1
      %p50 = por %p48, %p49
      %p51 = scmp.ne.s32.totalorder %s40, %s41
      %p52 = scmp.eq.s32.totalorder %s18, 0
      %p53 = por %p51, %p52
      %p54 = scmp.ne.s32.totalorder %s40, %s41
      %p55 = scmp.eq.s32.totalorder %s19, 1
      %p56 = por %p54, %p55
      %p58 = scmp.ne.s32.totalorder %s41, %s57
      %p59 = scmp.eq.s32.totalorder %s19, 0
      %p60 = por %p58, %p59
      %s61 = ssub.s32 %s20, %s32
      %p62 = scmp.eq.s32.totalorder %s61, 0
      %s64 = sadd.s32 %s63, 1
      %s65 = scalar_select %p62, %s63, %s64
      %p68 = pneg %p62
      %p69 = scmp.eq.s32.totalorder %s13, 1
      %p70 = por %p68, %p69
      %p71 = scmp.ne.s32.totalorder %s63, %s66
      %p72 = scmp.eq.s32.totalorder %s13, 0
      %p73 = por %p71, %p72
      %p74 = scmp.ne.s32.totalorder %s63, %s66
      %p75 = scmp.eq.s32.totalorder %s18, 1
      %p76 = por %p74, %p75
      %p77 = scmp.ne.s32.totalorder %s66, %s67
      %p78 = scmp.eq.s32.totalorder %s18, 0
      %p79 = por %p77, %p78
      %p80 = scmp.ne.s32.totalorder %s66, %s67
      %p81 = scmp.eq.s32.totalorder %s19, 1
      %p82 = por %p80, %p81
      %p84 = scmp.ne.s32.totalorder %s67, %s83
      %p85 = scmp.eq.s32.totalorder %s19, 0
      %p86 = por %p84, %p85
      %s87 = ssub.s32 %s20, %s32
      %p88 = scmp.eq.s32.totalorder %s87, 0
      %s90 = sadd.s32 %s89, 1
      %s91 = scalar_select %p88, %s89, %s90
      %p94 = pneg %p88
      %p95 = scmp.eq.s32.totalorder %s13, 1
      %p96 = por %p94, %p95
      %p97 = scmp.ne.s32.totalorder %s89, %s92
      %p98 = scmp.eq.s32.totalorder %s13, 0
      %p99 = por %p97, %p98
      %p100 = scmp.ne.s32.totalorder %s89, %s92
      %p101 = scmp.eq.s32.totalorder %s18, 1
      %p102 = por %p100, %p101
      %p103 = scmp.ne.s32.totalorder %s92, %s93
      %p104 = scmp.eq.s32.totalorder %s18, 0
      %p105 = por %p103, %p104
      %p106 = scmp.ne.s32.totalorder %s92, %s93
      %p107 = scmp.eq.s32.totalorder %s19, 1
      %p108 = por %p106, %p107
      %p110 = scmp.ne.s32.totalorder %s93, %s109
      %p111 = scmp.eq.s32.totalorder %s19, 0
      %p112 = por %p110, %p111
      %s114 = sadd.s32 %s113, 1
      %p117 = scmp.eq.s32.totalorder %s13, 1
      %p118 = scmp.ne.s32.totalorder %s113, %s115
      %p119 = scmp.eq.s32.totalorder %s13, 0
      %p120 = por %p118, %p119
      %p121 = scmp.ne.s32.totalorder %s113, %s115
      %p122 = scmp.eq.s32.totalorder %s18, 1
      %p123 = por %p121, %p122
      %p124 = scmp.ne.s32.totalorder %s115, %s116
      %p125 = scmp.eq.s32.totalorder %s18, 0
      %p126 = por %p124, %p125
      %p127 = scmp.ne.s32.totalorder %s115, %s116
      %p128 = scmp.eq.s32.totalorder %s19, 1
      %p129 = por %p127, %p128
      %p131 = scmp.ne.s32.totalorder %s116, %s130
      %p132 = scmp.eq.s32.totalorder %s19, 0
      %p133 = por %p131, %p132
      %s134 = ssub.s32 %s20, %s32
      %s135 = ssub.s32 %s21, %s28
      %s136 = sor.u32 %s134, %s135
      %p137 = scmp.eq.s32.totalorder %s136, 0
      %s139 = sadd.s32 %s138, 1
      %s140 = scalar_select %p137, %s138, %s139
      %p143 = pneg %p137
      %p144 = scmp.eq.s32.totalorder %s13, 1
      %p145 = por %p143, %p144
      %p146 = scmp.ne.s32.totalorder %s138, %s141
      %p147 = scmp.eq.s32.totalorder %s13, 0
      %p148 = por %p146, %p147
      %p149 = scmp.ne.s32.totalorder %s138, %s141
      %p150 = scmp.eq.s32.totalorder %s18, 1
      %p151 = por %p149, %p150
      %p152 = scmp.ne.s32.totalorder %s141, %s142
      %p153 = scmp.eq.s32.totalorder %s18, 0
      %p154 = por %p152, %p153
      %p155 = scmp.ne.s32.totalorder %s141, %s142
      %p156 = scmp.eq.s32.totalorder %s19, 1
      %p157 = por %p155, %p156
      %p159 = scmp.ne.s32.totalorder %s142, %s158
      %p160 = scmp.eq.s32.totalorder %s19, 0
      %p161 = por %p159, %p160
      %p162 = scmp.le.s32.totalorder 1, %s13
      %p163 = scmp.lt.s32.totalorder %s13, 3
      %p164 = pnand %p162, %p163
      %p165 = pneg %p164
      // Predicated region
      $region9: #{tpu_custom_call.1} parent=5 // pred_check
        _
      $region10: #{tpu_custom_call.1} parent=5 // pred_check_branch
        %167 = sbr.rel (%p164) target = $region12
      $region11: #{tpu_custom_call.1} parent=5 // pred_region
        %s168 = ssub.s32 %s13, 1
        // Predicated region
        $region13: #{tpu_custom_call.1} parent=11 // pred_check
          %p169 = pneg %p126
        $region14: #{tpu_custom_call.1} parent=11 // pred_check_branch
          %171 = sbr.rel (%p169) target = $region16
        $region15: #{tpu_custom_call.1} parent=11 // pred_region
          _
        $region16: #{tpu_custom_call.1} parent=11 // pred_fallthru
          _
      $region12: #{tpu_custom_call.1} parent=5 // pred_fallthru
        _
      %p172 = scmp.lt.s32.totalorder %s13, 2
      // Predicated region
      $region17: #{tpu_custom_call.1} parent=5 // pred_check
        %p173 = pneg %p172
      $region18: #{tpu_custom_call.1} parent=5 // pred_check_branch
        %175 = sbr.rel (%p173) target = $region20
      $region19: #{tpu_custom_call.1} parent=5 // pred_region
        // Predicated region
        $region21: #{tpu_custom_call.1} parent=19 // pred_check
          %p176 = pneg %p47
        $region22: #{tpu_custom_call.1} parent=19 // pred_check_branch
          %178 = sbr.rel (%p176) target = $region24
        $region23: #{tpu_custom_call.1} parent=19 // pred_region
          %s179 = smul.u32 16, %s21
          %p180 = scmp.lt.s32.totalorder %s20, 1
          %s181 = scalar_select %p180, %s20, 1
          %p182 = scmp.lt.s32.totalorder %s179, 15
          %s183 = scalar_select %p182, %s179, 15
          %s184 = smul.addr %s181, 16
          %s185 = sadd.s32 %s183, %s184
          %s186 = smul.addr %s185, 8
          %s187 = scalar_lea.vmem %s0, %s186
          %s188 = smul.u32 16, %s21
        $region24: #{tpu_custom_call.1} parent=19 // pred_fallthru
          _
        // Predicated region
        $region25: #{tpu_custom_call.1} parent=19 // pred_check
          %p189 = pneg %p73
        $region26: #{tpu_custom_call.1} parent=19 // pred_check_branch
          %191 = sbr.rel (%p189) target = $region28
        $region27: #{tpu_custom_call.1} parent=19 // pred_region
          %p192 = scmp.lt.s32.totalorder %s20, 1
          %s193 = scalar_select %p192, %s20, 1
          %s194 = smul.addr %s193, 16
          %s195 = smul.addr %s194, 4
          %s196 = scalar_lea.vmem %s1, %s195
        $region28: #{tpu_custom_call.1} parent=19 // pred_fallthru
          _
        // Predicated region
        $region29: #{tpu_custom_call.1} parent=19 // pred_check
          %p197 = pneg %p99
        $region30: #{tpu_custom_call.1} parent=19 // pred_check_branch
          %199 = sbr.rel (%p197) target = $region32
        $region31: #{tpu_custom_call.1} parent=19 // pred_region
          %p200 = scmp.lt.s32.totalorder %s20, 1
          %s201 = scalar_select %p200, %s20, 1
          %s202 = scalar_lea.vmem %s2, %s201
        $region32: #{tpu_custom_call.1} parent=19 // pred_fallthru
          _
      $region20: #{tpu_custom_call.1} parent=5 // pred_fallthru
        _
      %p203 = scmp.le.s32.totalorder 1, %s13
      %p204 = scmp.lt.s32.totalorder %s13, 3
      %p205 = pnand %p203, %p204
      %p206 = pneg %p205
      // Predicated region
      $region33: #{tpu_custom_call.1} parent=5 // pred_check
        _
      $region34: #{tpu_custom_call.1} parent=5 // pred_check_branch
        %208 = sbr.rel (%p205) target = $region36
      $region35: #{tpu_custom_call.1} parent=5 // pred_region
        %s209 = ssub.s32 %s13, 1
        %s210 = smul.u32 16, %s23
        %p211 = scmp.lt.s32.totalorder %s22, 1
        %s212 = scalar_select %p211, %s22, 1
        %p213 = scmp.lt.s32.totalorder %s210, 15
        %s214 = scalar_select %p213, %s210, 15
        %s215 = smul.addr %s212, 16
        %s216 = sadd.s32 %s214, %s215
        %s217 = smul.addr %s216, 8
        %s218 = scalar_lea.vmem %s0, %s217
        %p219 = pneg %p53
        %p220 = pneg %p50
        %p221 = scmp.lt.s32.totalorder %s22, 1
        %s222 = scalar_select %p221, %s22, 1
        %s223 = smul.addr %s222, 16
        %s224 = smul.addr %s223, 4
        %s225 = scalar_lea.vmem %s1, %s224
        %p226 = pneg %p79
        %p227 = pneg %p76
        %p228 = scmp.lt.s32.totalorder %s22, 1
        %s229 = scalar_select %p228, %s22, 1
        %s230 = scalar_lea.vmem %s2, %s229
        %p231 = pneg %p105
        %p232 = pneg %p102
        %p233 = pneg %p126
        %p234 = pneg %p123
        %p235 = pneg %p154
        %p236 = pneg %p151
        %s237 = sand.u32 %s141, 1
        %s238 = scalar_lea.sflag [#allocation3], %s237
        %s239 = sand.u32 %s141, 1
        %s240 = smul.addr %s239, 128
        %s241 = scalar_lea.vmem [#allocation2], %s240
        %s242 = smul.u32 16, %s23
        %p243 = scmp.lt.s32.totalorder %s22, 1
        %s244 = scalar_select %p243, %s22, 1
        %p245 = scmp.lt.s32.totalorder %s242, 15
        %s246 = scalar_select %p245, %s242, 15
        %s247 = smul.addr %s244, 16
        %s248 = sadd.s32 %s246, %s247
        %s249 = smul.addr %s248, 8
        %s250 = scalar_lea.vmem %s0, %s249
        %s251 = smul.u32 16, %s23
        %p252 = scmp.lt.s32.totalorder %s22, 1
        %s253 = scalar_select %p252, %s22, 1
        %s254 = smul.addr %s253, 16
        %s255 = smul.addr %s254, 4
        %s256 = scalar_lea.vmem %s1, %s255
        %p257 = scmp.lt.s32.totalorder %s22, 1
        %s258 = scalar_select %p257, %s22, 1
        %s259 = scalar_lea.vmem %s2, %s258
        %s260 = smul.u32 16, %s23
        %v262 = vld [vmem:[%s250] sm:$0xff]
        %v263 = vld [vmem:[%s250 + $0x8] sm:$0xff]
        %v264 = vld [vmem:[%s250 + $0x10] sm:$0xff]
        %v265 = vld [vmem:[%s250 + $0x18] sm:$0xff]
        %v266 = vld [vmem:[%s250 + $0x20] sm:$0xff]
        %v267 = vld [vmem:[%s250 + $0x28] sm:$0xff]
        %v268 = vld [vmem:[%s250 + $0x30] sm:$0xff]
        %v269 = vld [vmem:[%s250 + $0x38] sm:$0xff]
        %v270 = vld [vmem:[%s250 + $0x40] sm:$0xff]
        %v271 = vld [vmem:[%s250 + $0x48] sm:$0xff]
        %v272 = vld [vmem:[%s250 + $0x50] sm:$0xff]
        %v273 = vld [vmem:[%s250 + $0x58] sm:$0xff]
        %v274 = vld [vmem:[%s250 + $0x60] sm:$0xff]
        %v275 = vld [vmem:[%s250 + $0x68] sm:$0xff]
        %v276 = vld [vmem:[%s250 + $0x70] sm:$0xff]
        %v277 = vld [vmem:[%s250 + $0x78] sm:$0xff]
        %v278 = vld [vmem:[%s256] sm:$0xf]
        %v279 = vld [vmem:[%s256 + $0x4] sm:$0xf]
        %v280 = vld [vmem:[%s256 + $0x8] sm:$0xf]
        %v281 = vld [vmem:[%s256 + $0xc] sm:$0xf]
        %v282 = vld [vmem:[%s256 + $0x10] sm:$0xf]
        %v283 = vld [vmem:[%s256 + $0x14] sm:$0xf]
        %v284 = vld [vmem:[%s256 + $0x18] sm:$0xf]
        %v285 = vld [vmem:[%s256 + $0x1c] sm:$0xf]
        %v286 = vld [vmem:[%s256 + $0x20] sm:$0xf]
        %v287 = vld [vmem:[%s256 + $0x24] sm:$0xf]
        %v288 = vld [vmem:[%s256 + $0x28] sm:$0xf]
        %v289 = vld [vmem:[%s256 + $0x2c] sm:$0xf]
        %v290 = vld [vmem:[%s256 + $0x30] sm:$0xf]
        %v291 = vld [vmem:[%s256 + $0x34] sm:$0xf]
        %v292 = vld [vmem:[%s256 + $0x38] sm:$0xf]
        %v293 = vld [vmem:[%s256 + $0x3c] sm:$0xf]
        %v294 = vld [vmem:[%s259] sm:$0x1]
        %v295 = vld [vmem:[%s3] sm:$0x3]
        %v296 = vlaneseq
        %v297 = vshrl.u32 %v296, 7
        %v298 = vsub.s32 1, %v297
        %v299 = vrot.slane %v295, %v298
        %v300 = vmul.f32 %v262, %v299
        %v301 = vmul.f32 %v263, %v299
        %v302 = vmul.f32 %v264, %v299
        %v303 = vmul.f32 %v265, %v299
        %v304 = vmul.f32 %v266, %v299
        %v305 = vmul.f32 %v267, %v299
        %v306 = vmul.f32 %v268, %v299
        %v307 = vmul.f32 %v269, %v299
        %v308 = vmul.f32 %v270, %v299
        %v309 = vmul.f32 %v271, %v299
        %v310 = vmul.f32 %v272, %v299
        %v311 = vmul.f32 %v273, %v299
        %v312 = vmul.f32 %v274, %v299
        %v313 = vmul.f32 %v275, %v299
        %v314 = vmul.f32 %v276, %v299
        %v315 = vmul.f32 %v277, %v299
        %v316 = vlaneseq
        %v317 = vshrl.u32 %v316, 7
        %v318 = vsub.s32 0, %v317
        %v319 = vrot.slane %v295, %v318
        %v320 = vadd.f32 %v300, %v319
        %v321 = vadd.f32 %v301, %v319
        %v322 = vadd.f32 %v302, %v319
        %v323 = vadd.f32 %v303, %v319
        %v324 = vadd.f32 %v304, %v319
        %v325 = vadd.f32 %v305, %v319
        %v326 = vadd.f32 %v306, %v319
        %v327 = vadd.f32 %v307, %v319
        %v328 = vadd.f32 %v308, %v319
        %v329 = vadd.f32 %v309, %v319
        %v330 = vadd.f32 %v310, %v319
        %v331 = vadd.f32 %v311, %v319
        %v332 = vadd.f32 %v312, %v319
        %v333 = vadd.f32 %v313, %v319
        %v334 = vadd.f32 %v314, %v319
        %v335 = vadd.f32 %v315, %v319
        %v336 = vpack.c.bf16 %v321, %v320
        %v337 = vpack.c.bf16 %v323, %v322
        %v338 = vpack.c.bf16 %v325, %v324
        %v339 = vpack.c.bf16 %v327, %v326
        %v340 = vpack.c.bf16 %v329, %v328
        %v341 = vpack.c.bf16 %v331, %v330
        %v342 = vpack.c.bf16 %v333, %v332
        %v343 = vpack.c.bf16 %v335, %v334
        %v345 = vlaneseq
        %v346 = vshrl.u32 %v345, 7
        %v347 = vsub.s32 0, %v346
        %v348 = vrot.slane %v294, %v347
        %v366 = vunpack.c.l.b16 %v278
        %v367 = vunpack.c.l.b16 %v279
        %v368 = vunpack.c.l.b16 %v280
        %v369 = vunpack.c.l.b16 %v281
        %v370 = vunpack.c.l.b16 %v282
        %v371 = vunpack.c.l.b16 %v283
        %v372 = vunpack.c.l.b16 %v284
        %v373 = vunpack.c.l.b16 %v285
        %v374 = vunpack.c.l.b16 %v286
        %v375 = vunpack.c.l.b16 %v287
        %v376 = vunpack.c.l.b16 %v288
        %v377 = vunpack.c.l.b16 %v289
        %v378 = vunpack.c.l.b16 %v290
        %v379 = vunpack.c.l.b16 %v291
        %v380 = vunpack.c.l.b16 %v292
        %v381 = vunpack.c.l.b16 %v293
        %v382 = vpack.c.b16 %v367, %v366
        %v383 = vpack.c.b16 %v369, %v368
        %v384 = vpack.c.b16 %v371, %v370
        %v385 = vpack.c.b16 %v373, %v372
        %v386 = vpack.c.b16 %v375, %v374
        %v387 = vpack.c.b16 %v377, %v376
        %v388 = vpack.c.b16 %v379, %v378
        %v389 = vpack.c.b16 %v381, %v380
        %vm390 = vcmask 523264
        %v392 = vsel %vm390, %v336, 0
        %v395 = vsel %vm390, %v337, 0
        %v398 = vsel %vm390, %v338, 0
        %v401 = vsel %vm390, %v339, 0
        %v404 = vsel %vm390, %v340, 0
        %v407 = vsel %vm390, %v341, 0
        %v410 = vsel %vm390, %v342, 0
        %v413 = vsel %vm390, %v343, 0
        %v416 = vsel %vm390, %v382, 0
        %v419 = vsel %vm390, %v383, 0
        %v422 = vsel %vm390, %v384, 0
        %v425 = vsel %vm390, %v385, 0
        %v428 = vsel %vm390, %v386, 0
        %v431 = vsel %vm390, %v387, 0
        %v434 = vsel %vm390, %v388, 0
        %v437 = vsel %vm390, %v389, 0
        %439 = vmatprep.subr.bf16.mxu0 0
        %440 = vmatpush1.bf16.xpose.msra.mxu0 %v437
        %441 = vmatprep.subr.bf16.mxu0 0
        %442 = vmatpush1.bf16.xpose.msra.mxu0 %v434
        %443 = vmatprep.subr.bf16.mxu0 0
        %444 = vmatpush1.bf16.xpose.msra.mxu0 %v431
        %445 = vmatprep.subr.bf16.mxu0 0
        %446 = vmatpush1.bf16.xpose.msra.mxu0 %v428
        %447 = vmatprep.subr.bf16.mxu0 0
        %448 = vmatpush1.bf16.xpose.msra.mxu0 %v425
        %449 = vmatprep.subr.bf16.mxu0 0
        %450 = vmatpush1.bf16.xpose.msra.mxu0 %v422
        %451 = vmatprep.subr.bf16.mxu0 0
        %452 = vmatpush1.bf16.xpose.msra.mxu0 %v419
        %453 = vmatprep.subr.bf16.mxu0 0
        %454 = vmatpush1.bf16.xpose.msra.mxu0 %v416
        %455 = vmatprep.subr.bf16.mxu0 0
        %456 = vmatpush2.bf16.xpose.msra.mxu0 0
        %457 = vmatprep.subr.bf16.mxu0 0
        %458 = vmatpush2.bf16.xpose.msra.mxu0 0
        %459 = vmatprep.subr.bf16.mxu0 0
        %460 = vmatpush2.bf16.xpose.msra.mxu0 0
        %461 = vmatprep.subr.bf16.mxu0 0
        %462 = vmatpush2.bf16.xpose.msra.mxu0 0
        %463 = vmatprep.subr.bf16.mxu0 0
        %464 = vmatpush2.bf16.xpose.msra.mxu0 0
        %465 = vmatprep.subr.bf16.mxu0 0
        %466 = vmatpush2.bf16.xpose.msra.mxu0 0
        %467 = vmatprep.subr.bf16.mxu0 0
        %468 = vmatpush2.bf16.xpose.msra.mxu0 0
        %469 = vmatprep.subr.bf16.mxu0 0
        %470 = vmatpush2.bf16.xpose.msra.mxu0 0
        %471 = vmatprep.mubr.bf16.mxu0 0
        %472 = vmatmul.mubr.bf16.gmra.mxu0 %v392
        %v473 = vpop.f32.mrf.mxu0
        %v474 = vadd.f32 %v348, %v473
        %v475 = vpop.f32.mrf.mxu0
        %v476 = vpop.f32.mrf.mxu0
        %v477 = vadd.f32 %v348, %v476
        %v478 = vpop.f32.mrf.mxu0
        %479 = vmatprep.mubr.bf16.mxu0 0
        %480 = vmatmul.mubr.bf16.gmra.mxu0 %v395
        %v481 = vpop.f32.mrf.mxu0
        %v482 = vadd.f32 %v348, %v481
        %v483 = vpop.f32.mrf.mxu0
        %v484 = vpop.f32.mrf.mxu0
        %v485 = vadd.f32 %v348, %v484
        %v486 = vpop.f32.mrf.mxu0
        %487 = vmatprep.mubr.bf16.mxu0 0
        %488 = vmatmul.mubr.bf16.gmra.mxu0 %v398
        %v489 = vpop.f32.mrf.mxu0
        %v490 = vadd.f32 %v348, %v489
        %v491 = vpop.f32.mrf.mxu0
        %v492 = vpop.f32.mrf.mxu0
        %v493 = vadd.f32 %v348, %v492
        %v494 = vpop.f32.mrf.mxu0
        %495 = vmatprep.mubr.bf16.mxu0 0
        %496 = vmatmul.mubr.bf16.gmra.mxu0 %v401
        %v497 = vpop.f32.mrf.mxu0
        %v498 = vadd.f32 %v348, %v497
        %v499 = vpop.f32.mrf.mxu0
        %v500 = vpop.f32.mrf.mxu0
        %v501 = vadd.f32 %v348, %v500
        %v502 = vpop.f32.mrf.mxu0
        %503 = vmatprep.mubr.bf16.mxu0 0
        %504 = vmatmul.mubr.bf16.gmra.mxu0 %v404
        %v505 = vpop.f32.mrf.mxu0
        %v506 = vadd.f32 %v348, %v505
        %v507 = vpop.f32.mrf.mxu0
        %v508 = vpop.f32.mrf.mxu0
        %v509 = vadd.f32 %v348, %v508
        %v510 = vpop.f32.mrf.mxu0
        %511 = vmatprep.mubr.bf16.mxu0 0
        %512 = vmatmul.mubr.bf16.gmra.mxu0 %v407
        %v513 = vpop.f32.mrf.mxu0
        %v514 = vadd.f32 %v348, %v513
        %v515 = vpop.f32.mrf.mxu0
        %v516 = vpop.f32.mrf.mxu0
        %v517 = vadd.f32 %v348, %v516
        %v518 = vpop.f32.mrf.mxu0
        %519 = vmatprep.mubr.bf16.mxu0 0
        %520 = vmatmul.mubr.bf16.gmra.mxu0 %v410
        %v521 = vpop.f32.mrf.mxu0
        %v522 = vadd.f32 %v348, %v521
        %v523 = vpop.f32.mrf.mxu0
        %v524 = vpop.f32.mrf.mxu0
        %v525 = vadd.f32 %v348, %v524
        %v526 = vpop.f32.mrf.mxu0
        %527 = vmatprep.mubr.bf16.mxu0 0
        %528 = vmatmul.mubr.bf16.gmra.mxu0 %v413
        %v529 = vpop.f32.mrf.mxu0
        %v530 = vadd.f32 %v348, %v529
        %v531 = vpop.f32.mrf.mxu0
        %v532 = vpop.f32.mrf.mxu0
        %v533 = vadd.f32 %v348, %v532
        %v534 = vpop.f32.mrf.mxu0
        %535 = vdwg.mxu0
        %536 = vmax.xlane.f32.xlu0 %v474
        %v537 = vpop.xlane.xlu0 %536
        %538 = vmax.xlane.f32.xlu0 %v477
        %v539 = vpop.xlane.xlu0 %538
        %540 = vmax.xlane.f32.xlu0 %v482
        %v541 = vpop.xlane.xlu0 %540
        %542 = vmax.xlane.f32.xlu0 %v485
        %v543 = vpop.xlane.xlu0 %542
        %544 = vmax.xlane.f32.xlu0 %v490
        %v545 = vpop.xlane.xlu0 %544
        %546 = vmax.xlane.f32.xlu0 %v493
        %v547 = vpop.xlane.xlu0 %546
        %548 = vmax.xlane.f32.xlu0 %v498
        %v549 = vpop.xlane.xlu0 %548
        %550 = vmax.xlane.f32.xlu0 %v501
        %v551 = vpop.xlane.xlu0 %550
        %552 = vmax.xlane.f32.xlu0 %v506
        %v553 = vpop.xlane.xlu0 %552
        %554 = vmax.xlane.f32.xlu0 %v509
        %v555 = vpop.xlane.xlu0 %554
        %556 = vmax.xlane.f32.xlu0 %v514
        %v557 = vpop.xlane.xlu0 %556
        %558 = vmax.xlane.f32.xlu0 %v517
        %v559 = vpop.xlane.xlu0 %558
        %560 = vmax.xlane.f32.xlu0 %v522
        %v561 = vpop.xlane.xlu0 %560
        %562 = vmax.xlane.f32.xlu0 %v525
        %v563 = vpop.xlane.xlu0 %562
        %564 = vmax.xlane.f32.xlu0 %v530
        %v565 = vpop.xlane.xlu0 %564
        %566 = vmax.xlane.f32.xlu0 %v533
        %v567 = vpop.xlane.xlu0 %566
        %v568 = vsub.f32 %v474, %v537
        %v569 = vsub.f32 %v477, %v539
        %v570 = vsub.f32 %v482, %v541
        %v571 = vsub.f32 %v485, %v543
        %v572 = vsub.f32 %v490, %v545
        %v573 = vsub.f32 %v493, %v547
        %v574 = vsub.f32 %v498, %v549
        %v575 = vsub.f32 %v501, %v551
        %v576 = vsub.f32 %v506, %v553
        %v577 = vsub.f32 %v509, %v555
        %v578 = vsub.f32 %v514, %v557
        %v579 = vsub.f32 %v517, %v559
        %v580 = vsub.f32 %v522, %v561
        %v581 = vsub.f32 %v525, %v563
        %v582 = vsub.f32 %v530, %v565
        %v583 = vsub.f32 %v533, %v567
        %v584 = vmul.f32 %v568, 1.442695
        %v585 = vpow.pop %v584
        %v586 = vmul.f32 %v569, 1.442695
        %v587 = vpow.pop %v586
        %v588 = vmul.f32 %v570, 1.442695
        %v589 = vpow.pop %v588
        %v590 = vmul.f32 %v571, 1.442695
        %v591 = vpow.pop %v590
        %v592 = vmul.f32 %v572, 1.442695
        %v593 = vpow.pop %v592
        %v594 = vmul.f32 %v573, 1.442695
        %v595 = vpow.pop %v594
        %v596 = vmul.f32 %v574, 1.442695
        %v597 = vpow.pop %v596
        %v598 = vmul.f32 %v575, 1.442695
        %v599 = vpow.pop %v598
        %v600 = vmul.f32 %v576, 1.442695
        %v601 = vpow.pop %v600
        %v602 = vmul.f32 %v577, 1.442695
        %v603 = vpow.pop %v602
        %v604 = vmul.f32 %v578, 1.442695
        %v605 = vpow.pop %v604
        %v606 = vmul.f32 %v579, 1.442695
        %v607 = vpow.pop %v606
        %v608 = vmul.f32 %v580, 1.442695
        %v609 = vpow.pop %v608
        %v610 = vmul.f32 %v581, 1.442695
        %v611 = vpow.pop %v610
        %v612 = vmul.f32 %v582, 1.442695
        %v613 = vpow.pop %v612
        %v614 = vmul.f32 %v583, 1.442695
        %v615 = vpow.pop %v614
        %616 = vadd.xlane.f32.xlu0 %v585
        %v617 = vpop.xlane.xlu0 %616
        %618 = vadd.xlane.f32.xlu0 %v587
        %v619 = vpop.xlane.xlu0 %618
        %620 = vadd.xlane.f32.xlu0 %v589
        %v621 = vpop.xlane.xlu0 %620
        %622 = vadd.xlane.f32.xlu0 %v591
        %v623 = vpop.xlane.xlu0 %622
        %624 = vadd.xlane.f32.xlu0 %v593
        %v625 = vpop.xlane.xlu0 %624
        %626 = vadd.xlane.f32.xlu0 %v595
        %v627 = vpop.xlane.xlu0 %626
        %628 = vadd.xlane.f32.xlu0 %v597
        %v629 = vpop.xlane.xlu0 %628
        %630 = vadd.xlane.f32.xlu0 %v599
        %v631 = vpop.xlane.xlu0 %630
        %632 = vadd.xlane.f32.xlu0 %v601
        %v633 = vpop.xlane.xlu0 %632
        %634 = vadd.xlane.f32.xlu0 %v603
        %v635 = vpop.xlane.xlu0 %634
        %636 = vadd.xlane.f32.xlu0 %v605
        %v637 = vpop.xlane.xlu0 %636
        %638 = vadd.xlane.f32.xlu0 %v607
        %v639 = vpop.xlane.xlu0 %638
        %640 = vadd.xlane.f32.xlu0 %v609
        %v641 = vpop.xlane.xlu0 %640
        %642 = vadd.xlane.f32.xlu0 %v611
        %v643 = vpop.xlane.xlu0 %642
        %644 = vadd.xlane.f32.xlu0 %v613
        %v645 = vpop.xlane.xlu0 %644
        %646 = vadd.xlane.f32.xlu0 %v615
        %v647 = vpop.xlane.xlu0 %646
        %v648 = vrcp.pop %v617
        %v649 = vrcp.pop %v619
        %v650 = vrcp.pop %v621
        %v651 = vrcp.pop %v623
        %v652 = vrcp.pop %v625
        %v653 = vrcp.pop %v627
        %v654 = vrcp.pop %v629
        %v655 = vrcp.pop %v631
        %v656 = vrcp.pop %v633
        %v657 = vrcp.pop %v635
        %v658 = vrcp.pop %v637
        %v659 = vrcp.pop %v639
        %v660 = vrcp.pop %v641
        %v661 = vrcp.pop %v643
        %v662 = vrcp.pop %v645
        %v663 = vrcp.pop %v647
        %v664 = vpack.c.bf16 %v587, %v585
        %v665 = vpack.c.bf16 %v591, %v589
        %v666 = vpack.c.bf16 %v595, %v593
        %v667 = vpack.c.bf16 %v599, %v597
        %v668 = vpack.c.bf16 %v603, %v601
        %v669 = vpack.c.bf16 %v607, %v605
        %v670 = vpack.c.bf16 %v611, %v609
        %v671 = vpack.c.bf16 %v615, %v613
        %680 = vmatprep.subr.bf16.mxu0 0
        %681 = vmatpush1.bf16.msra.mxu0 %v389
        %682 = vmatprep.subr.bf16.mxu0 0
        %683 = vmatpush1.bf16.msra.mxu0 %v388
        %684 = vmatprep.subr.bf16.mxu0 0
        %685 = vmatpush1.bf16.msra.mxu0 %v387
        %686 = vmatprep.subr.bf16.mxu0 0
        %687 = vmatpush1.bf16.msra.mxu0 %v386
        %688 = vmatprep.subr.bf16.mxu0 0
        %689 = vmatpush1.bf16.msra.mxu0 %v385
        %690 = vmatprep.subr.bf16.mxu0 0
        %691 = vmatpush1.bf16.msra.mxu0 %v384
        %692 = vmatprep.subr.bf16.mxu0 0
        %693 = vmatpush1.bf16.msra.mxu0 %v383
        %694 = vmatprep.subr.bf16.mxu0 0
        %695 = vmatpush1.bf16.msra.mxu0 %v382
        %696 = vmatprep.subr.bf16.mxu0 0
        %697 = vmatpush2.bf16.msra.mxu0 0
        %698 = vmatprep.subr.bf16.mxu0 0
        %699 = vmatpush2.bf16.msra.mxu0 0
        %700 = vmatprep.subr.bf16.mxu0 0
        %701 = vmatpush2.bf16.msra.mxu0 0
        %702 = vmatprep.subr.bf16.mxu0 0
        %703 = vmatpush2.bf16.msra.mxu0 0
        %704 = vmatprep.subr.bf16.mxu0 0
        %705 = vmatpush2.bf16.msra.mxu0 0
        %706 = vmatprep.subr.bf16.mxu0 0
        %707 = vmatpush2.bf16.msra.mxu0 0
        %708 = vmatprep.subr.bf16.mxu0 0
        %709 = vmatpush2.bf16.msra.mxu0 0
        %710 = vmatprep.subr.bf16.mxu0 0
        %711 = vmatpush2.bf16.msra.mxu0 0
        %712 = vmatprep.mubr.bf16.mxu0 0
        %713 = vmatmul.mubr.bf16.gmra.mxu0 %v664
        %v714 = vpop.f32.mrf.mxu0
        %v715 = vadd.f32 0.0, %v714
        %v716 = vpop.f32.mrf.mxu0
        %v717 = vpop.f32.mrf.mxu0
        %v718 = vadd.f32 0.0, %v717
        %v719 = vpop.f32.mrf.mxu0
        %720 = vmatprep.mubr.bf16.mxu0 0
        %721 = vmatmul.mubr.bf16.gmra.mxu0 %v665
        %v722 = vpop.f32.mrf.mxu0
        %v723 = vadd.f32 0.0, %v722
        %v724 = vpop.f32.mrf.mxu0
        %v725 = vpop.f32.mrf.mxu0
        %v726 = vadd.f32 0.0, %v725
        %v727 = vpop.f32.mrf.mxu0
        %728 = vmatprep.mubr.bf16.mxu0 0
        %729 = vmatmul.mubr.bf16.gmra.mxu0 %v666
        %v730 = vpop.f32.mrf.mxu0
        %v731 = vadd.f32 0.0, %v730
        %v732 = vpop.f32.mrf.mxu0
        %v733 = vpop.f32.mrf.mxu0
        %v734 = vadd.f32 0.0, %v733
        %v735 = vpop.f32.mrf.mxu0
        %736 = vmatprep.mubr.bf16.mxu0 0
        %737 = vmatmul.mubr.bf16.gmra.mxu0 %v667
        %v738 = vpop.f32.mrf.mxu0
        %v739 = vadd.f32 0.0, %v738
        %v740 = vpop.f32.mrf.mxu0
        %v741 = vpop.f32.mrf.mxu0
        %v742 = vadd.f32 0.0, %v741
        %v743 = vpop.f32.mrf.mxu0
        %744 = vmatprep.mubr.bf16.mxu0 0
        %745 = vmatmul.mubr.bf16.gmra.mxu0 %v668
        %v746 = vpop.f32.mrf.mxu0
        %v747 = vadd.f32 0.0, %v746
        %v748 = vpop.f32.mrf.mxu0
        %v749 = vpop.f32.mrf.mxu0
        %v750 = vadd.f32 0.0, %v749
        %v751 = vpop.f32.mrf.mxu0
        %752 = vmatprep.mubr.bf16.mxu0 0
        %753 = vmatmul.mubr.bf16.gmra.mxu0 %v669
        %v754 = vpop.f32.mrf.mxu0
        %v755 = vadd.f32 0.0, %v754
        %v756 = vpop.f32.mrf.mxu0
        %v757 = vpop.f32.mrf.mxu0
        %v758 = vadd.f32 0.0, %v757
        %v759 = vpop.f32.mrf.mxu0
        %760 = vmatprep.mubr.bf16.mxu0 0
        %761 = vmatmul.mubr.bf16.gmra.mxu0 %v670
        %v762 = vpop.f32.mrf.mxu0
        %v763 = vadd.f32 0.0, %v762
        %v764 = vpop.f32.mrf.mxu0
        %v765 = vpop.f32.mrf.mxu0
        %v766 = vadd.f32 0.0, %v765
        %v767 = vpop.f32.mrf.mxu0
        %768 = vmatprep.mubr.bf16.mxu0 0
        %769 = vmatmul.mubr.bf16.gmra.mxu0 %v671
        %v770 = vpop.f32.mrf.mxu0
        %v771 = vadd.f32 0.0, %v770
        %v772 = vpop.f32.mrf.mxu0
        %v773 = vpop.f32.mrf.mxu0
        %v774 = vadd.f32 0.0, %v773
        %v775 = vpop.f32.mrf.mxu0
        %776 = vdwg.mxu0
        %v777 = vmul.f32 %v715, %v648
        %v778 = vmul.f32 %v718, %v649
        %v779 = vmul.f32 %v723, %v650
        %v780 = vmul.f32 %v726, %v651
        %v781 = vmul.f32 %v731, %v652
        %v782 = vmul.f32 %v734, %v653
        %v783 = vmul.f32 %v739, %v654
        %v784 = vmul.f32 %v742, %v655
        %v785 = vmul.f32 %v747, %v656
        %v786 = vmul.f32 %v750, %v657
        %v787 = vmul.f32 %v755, %v658
        %v788 = vmul.f32 %v758, %v659
        %v789 = vmul.f32 %v763, %v660
        %v790 = vmul.f32 %v766, %v661
        %v791 = vmul.f32 %v771, %v662
        %v792 = vmul.f32 %v774, %v663
        %v793 = vmul.f32 %v262, %v777
        %v794 = vmul.f32 %v263, %v778
        %v795 = vmul.f32 %v264, %v779
        %v796 = vmul.f32 %v265, %v780
        %v797 = vmul.f32 %v266, %v781
        %v798 = vmul.f32 %v267, %v782
        %v799 = vmul.f32 %v268, %v783
        %v800 = vmul.f32 %v269, %v784
        %v801 = vmul.f32 %v270, %v785
        %v802 = vmul.f32 %v271, %v786
        %v803 = vmul.f32 %v272, %v787
        %v804 = vmul.f32 %v273, %v788
        %v805 = vmul.f32 %v274, %v789
        %v806 = vmul.f32 %v275, %v790
        %v807 = vmul.f32 %v276, %v791
        %v808 = vmul.f32 %v277, %v792
        %825 = vrot.lane.b32.xlu0 %v793, 64
        %v826 = vpop.permute.xlu0 %825
        %827 = vrot.lane.b32.xlu0 %v794, 64
        %v828 = vpop.permute.xlu0 %827
        %829 = vrot.lane.b32.xlu0 %v795, 64
        %v830 = vpop.permute.xlu0 %829
        %831 = vrot.lane.b32.xlu0 %v796, 64
        %v832 = vpop.permute.xlu0 %831
        %833 = vrot.lane.b32.xlu0 %v797, 64
        %v834 = vpop.permute.xlu0 %833
        %835 = vrot.lane.b32.xlu0 %v798, 64
        %v836 = vpop.permute.xlu0 %835
        %837 = vrot.lane.b32.xlu0 %v799, 64
        %v838 = vpop.permute.xlu0 %837
        %839 = vrot.lane.b32.xlu0 %v800, 64
        %v840 = vpop.permute.xlu0 %839
        %841 = vrot.lane.b32.xlu0 %v801, 64
        %v842 = vpop.permute.xlu0 %841
        %843 = vrot.lane.b32.xlu0 %v802, 64
        %v844 = vpop.permute.xlu0 %843
        %845 = vrot.lane.b32.xlu0 %v803, 64
        %v846 = vpop.permute.xlu0 %845
        %847 = vrot.lane.b32.xlu0 %v804, 64
        %v848 = vpop.permute.xlu0 %847
        %849 = vrot.lane.b32.xlu0 %v805, 64
        %v850 = vpop.permute.xlu0 %849
        %851 = vrot.lane.b32.xlu0 %v806, 64
        %v852 = vpop.permute.xlu0 %851
        %853 = vrot.lane.b32.xlu0 %v807, 64
        %v854 = vpop.permute.xlu0 %853
        %855 = vrot.lane.b32.xlu0 %v808, 64
        %v856 = vpop.permute.xlu0 %855
        %v873 = vsel %vm390, %v777, %v826
        %v874 = vsel %vm390, %v778, %v828
        %v875 = vsel %vm390, %v779, %v830
        %v876 = vsel %vm390, %v780, %v832
        %v877 = vsel %vm390, %v781, %v834
        %v878 = vsel %vm390, %v782, %v836
        %v879 = vsel %vm390, %v783, %v838
        %v880 = vsel %vm390, %v784, %v840
        %v881 = vsel %vm390, %v785, %v842
        %v882 = vsel %vm390, %v786, %v844
        %v883 = vsel %vm390, %v787, %v846
        %v884 = vsel %vm390, %v788, %v848
        %v885 = vsel %vm390, %v789, %v850
        %v886 = vsel %vm390, %v790, %v852
        %v887 = vsel %vm390, %v791, %v854
        %v888 = vsel %vm390, %v792, %v856
        %889 = vst [vmem:[%s241] sm:$0xff] %v873
        %890 = vst [vmem:[%s241 + $0x8] sm:$0xff] %v874
        %891 = vst [vmem:[%s241 + $0x10] sm:$0xff] %v875
        %892 = vst [vmem:[%s241 + $0x18] sm:$0xff] %v876
        %893 = vst [vmem:[%s241 + $0x20] sm:$0xff] %v877
        %894 = vst [vmem:[%s241 + $0x28] sm:$0xff] %v878
        %895 = vst [vmem:[%s241 + $0x30] sm:$0xff] %v879
        %896 = vst [vmem:[%s241 + $0x38] sm:$0xff] %v880
        %897 = vst [vmem:[%s241 + $0x40] sm:$0xff] %v881
        %898 = vst [vmem:[%s241 + $0x48] sm:$0xff] %v882
        %899 = vst [vmem:[%s241 + $0x50] sm:$0xff] %v883
        %900 = vst [vmem:[%s241 + $0x58] sm:$0xff] %v884
        %901 = vst [vmem:[%s241 + $0x60] sm:$0xff] %v885
        %902 = vst [vmem:[%s241 + $0x68] sm:$0xff] %v886
        %903 = vst [vmem:[%s241 + $0x70] sm:$0xff] %v887
        %904 = vst [vmem:[%s241 + $0x78] sm:$0xff] %v888
        %s905 = sand.u32 %s141, 1
        %s906 = scalar_lea.sflag [#allocation3], %s905
        %s907 = sand.u32 %s141, 1
        %s908 = smul.addr %s907, 128
        %s909 = scalar_lea.vmem [#allocation2], %s908
        // Predicated region
        $region37: #{tpu_custom_call.1} parent=35 // pred_check
          %p910 = pneg %p151
        $region38: #{tpu_custom_call.1} parent=35 // pred_check_branch
          %912 = sbr.rel (%p910) target = $region40
        $region39: #{tpu_custom_call.1} parent=35 // pred_region
          %s913 = smul.u32 16, %s23
          %s915 = ssub.s32 2048, 2048
          %916 = vsyncadd %s906, %s915
          %s917 = smul.addr %s22, 16
          %s918 = sadd.s32 %s913, %s917
          %s919 = smul.addr %s918, 128
          %s920 = scalar_lea.hbm %s4, %s919
          %s921 = sshll.u32 %s909, 4
          %s922 = int_to_ptr.vmem [resolvable:$true] %s921
          %927 = dma.vmem_to_hbm [thread:$0]  %s922, 2048, %s920, %s906, 128, 128, 8
        $region40: #{tpu_custom_call.1} parent=35 // pred_fallthru
          _
      $region36: #{tpu_custom_call.1} parent=5 // pred_fallthru
        _
      %p928 = scmp.le.s32.totalorder 2, %s13
      // Predicated region
      $region41: #{tpu_custom_call.1} parent=5 // pred_check
        %p929 = pneg %p928
      $region42: #{tpu_custom_call.1} parent=5 // pred_check_branch
        %931 = sbr.rel (%p929) target = $region44
      $region43: #{tpu_custom_call.1} parent=5 // pred_region
        %s932 = ssub.s32 %s13, 2
        // Predicated region
        $region45: #{tpu_custom_call.1} parent=43 // pred_check
          %p933 = pneg %p157
        $region46: #{tpu_custom_call.1} parent=43 // pred_check_branch
          %935 = sbr.rel (%p933) target = $region48
        $region47: #{tpu_custom_call.1} parent=43 // pred_region
          %s936 = sand.u32 %s142, 1
          %s937 = scalar_lea.sflag [#allocation3], %s936
          %s938 = sand.u32 %s142, 1
          %s939 = smul.addr %s938, 128
          %s940 = scalar_lea.vmem [#allocation2], %s939
          %941 = dma.done %s937, 2048
        $region48: #{tpu_custom_call.1} parent=43 // pred_fallthru
          _
      $region44: #{tpu_custom_call.1} parent=5 // pred_fallthru
        _
    $region6: #{tpu_custom_call.1} parent=1 // loop_footer
      %s17 = sadd.s32 1, %s13
    $region7: #{tpu_custom_call.1} parent=1 // loop_footer_branch
      %12 = sbr.rel target = $region3
    $region8: #{tpu_custom_call.1} parent=1 // loop_exit
      _
    %942 = vsyncpa [#allocation3], 1
    %s943 = scalar_lea.sflag [#allocation3], 1
    %944 = vsyncpa %s943, 1

</llo_original>
